<compile_context>
chip_gen: v5e
topology: v5e:2x2
jax: 0.10.0
libtpu: 0.0.40
codegen_flags: <defaults>
</compile_context>

<pallas_src>
import math
import functools

import jax
import jax.numpy as jnp
from jax.experimental import pallas as pl
from jax.experimental.pallas import tpu as pltpu


def _build_positional_table(d_model: int, max_len: int) -> jnp.ndarray:
    """Matches the PyTorch __init__ buffer exactly (shape (1, max_len, d_model))."""
    position = jnp.arange(0, max_len, dtype=jnp.float32)[:, None]            # (max_len, 1)
    div_term = jnp.exp(
        jnp.arange(0, d_model, 2, dtype=jnp.float32) * -(math.log(10000.0) / d_model)
    )                                                                         # (d_model//2,)
    pe = jnp.zeros((max_len, d_model), dtype=jnp.float32)
    pe = pe.at[:, 0::2].set(jnp.sin(position * div_term))
    pe = pe.at[:, 1::2].set(jnp.cos(position * div_term))
    return pe[None, :, :]                                                     # (1, max_len, d_model)


# ---------------------------------------------------------------------------
# Kernels
# ---------------------------------------------------------------------------

def _pos_emb_eval_kernel(x_ref, pe_ref, o_ref):
    # x_ref: (TB, TS, D), pe_ref: (1, TS, D) -> broadcast add over the batch tile.
    o_ref[...] = (x_ref[...] + pe_ref[...]).astype(o_ref.dtype)


def _pos_emb_dropout_kernel(seed_ref, x_ref, pe_ref, o_ref, *, p: float):
    # x_ref: (TB, TS, D), pe_ref: (1, TS, D)
    y = x_ref[...] + pe_ref[...]

    # Inverted dropout via the TPU hardware PRNG. Each grid step re-seeds from
    # (base_seed, flat_step), so the result is deterministic and independent of
    # grid execution order -> "parallel" dimension semantics is safe (v7x).
    step = pl.program_id(0) * pl.num_programs(1) + pl.program_id(1)
    pltpu.prng_seed(seed_ref[0], step)
    bits = pltpu.bitcast(pltpu.prng_random_bits(y.shape), jnp.uint32)

    # keep-prob = 1 - p. Clamp so p close to 1.0 cannot wrap uint32 (the exact
    # p >= 1.0 case is handled in the wrapper and never reaches the kernel).
    threshold = jnp.uint32(min(int(round(p * (2.0 ** 32))), 2 ** 32 - 1))
    scale = 1.0 / (1.0 - p)
    # One select + one multiply; no zeros_like materialization of a full y copy.
    y = y * jnp.where(bits >= threshold, scale, 0.0).astype(y.dtype)

    o_ref[...] = y.astype(o_ref.dtype)


# ---------------------------------------------------------------------------
# Tiling heuristic
# ---------------------------------------------------------------------------

def _choose_tiles(B, S, D, itemsize):
    """Pick (batch_tile, seq_tile).

    Goal: each block carries as many rows (TB*TS on the second-to-last axis) as
    possible — small per-step blocks leave a purely HBM-bound kernel dominated
    by per-grid-step overhead — while the double-buffered working set
    (x block + out block + pe block, x2 pipeline buffers) stays well under the
    most conservative scoped-VMEM default (v5e: 16 MiB).
    """
    budget_bytes = 8 * 1024 * 1024
    bytes_per_row = D * itemsize
    # working set ~= 2 buffers * (x rows + out rows + pe rows) <= 6*rows*bytes_per_row
    max_rows = max(8, budget_bytes // (6 * bytes_per_row))

    if S <= max_rows:
        ts = S                                      # full seq dim: always layout-legal
        tb = max(1, min(B, max_rows // max(S, 1)))  # fold batch into the block
        while B % tb != 0:                          # keep the grid exact
            tb -= 1
    else:
        tb = 1
        ts = S
        cand = (max_rows // 8) * 8                  # seq tile must be a multiple of 8
        while cand >= 8:
            if S % cand == 0:
                ts = cand
                break
            cand -= 8
        # TODO(synk): if S is huge with no multiple-of-8 divisor <= max_rows this
        # falls back to ts = S (may exceed the VMEM target; rare in practice).
    return tb, ts


# ---------------------------------------------------------------------------
# Forward wrapper
# ---------------------------------------------------------------------------

def positional_embedding_forward(x, pe_table, *, p=0.1, train=False, seed=0):
    """x: (B, S, D).  pe_table: (1, max_len, D) float32 (cast to x.dtype here)."""
    B, S, D = x.shape
    pe = pe_table[:, :S, :].astype(x.dtype)          # (1, S, D); halves HBM read for bf16

    use_dropout = bool(train) and p > 0.0
    if use_dropout and p >= 1.0:
        # nn.Dropout(p=1.0) zeros everything; handle exactly (avoids uint32 wrap).
        return jnp.zeros_like(x)

    tb, ts = _choose_tiles(B, S, D, jnp.dtype(x.dtype).itemsize)
    grid = (B // tb, S // ts)

    # d_model defaults to 128, so the output last dim is already lane-dense
    # (full-width vst). For D not a multiple of 128, consider a wrapper reshape
    # to a lane-dense slab; block last dim == full D remains legal either way.
    x_block = (tb, ts, D)
    pe_block = (1, ts, D)

    compiler_params = pltpu.CompilerParams(
        dimension_semantics=("parallel", "parallel"),
        vmem_limit_bytes=32 * 1024 * 1024,
    )
    out_shape = jax.ShapeDtypeStruct((B, S, D), x.dtype)

    if not use_dropout:
        # Eval path: plain GridSpec, no scalar prefetch, no seed argument.
        grid_spec = pl.GridSpec(
            grid=grid,
            in_specs=[
                pl.BlockSpec(x_block, lambda bi, si: (bi, si, 0)),
                pl.BlockSpec(pe_block, lambda bi, si: (0, si, 0)),
            ],
            out_specs=pl.BlockSpec(x_block, lambda bi, si: (bi, si, 0)),
        )
        return pl.pallas_call(
            _pos_emb_eval_kernel,
            out_shape=out_shape,
            grid_spec=grid_spec,
            compiler_params=compiler_params,
        )(x, pe)

    # Training path: seed prefetched to SMEM, dropout fused in-kernel.
    seed_arr = jnp.asarray([seed], dtype=jnp.int32)
    kernel = functools.partial(_pos_emb_dropout_kernel, p=float(p))
    grid_spec = pltpu.PrefetchScalarGridSpec(
        num_scalar_prefetch=1,
        grid=grid,
        in_specs=[
            pl.BlockSpec(x_block, lambda bi, si, seed_ref: (bi, si, 0)),
            pl.BlockSpec(pe_block, lambda bi, si, seed_ref: (0, si, 0)),
        ],
        out_specs=pl.BlockSpec(x_block, lambda bi, si, seed_ref: (bi, si, 0)),
    )
    return pl.pallas_call(
        kernel,
        out_shape=out_shape,
        grid_spec=grid_spec,
        compiler_params=compiler_params,
    )(seed_arr, x, pe)


# ---------------------------------------------------------------------------
# Demo / self-test
# ---------------------------------------------------------------------------

if __name__ == "__main__":
    # Small shapes consistent with the module defaults: d_model=128, short seq.
    B, S, D = 2, 8, 128
    MAX_LEN = 64

    key = jax.random.PRNGKey(0)
    x = jax.random.normal(key, (B, S, D), dtype=jnp.float32)
    pe_table = _build_positional_table(d_model=D, max_len=MAX_LEN)

    # Eval-mode forward (dropout = identity): exactly x + pe[:, :S]
    out_eval = positional_embedding_forward(x, pe_table, p=0.1, train=False)
    out_eval = jax.block_until_ready(out_eval)

    ref = x + pe_table[:, :S, :]
    assert out_eval.shape == (B, S, D)
    assert jnp.allclose(out_eval, ref, atol=1e-6, rtol=1e-6), "eval-mode mismatch vs reference"

    # The fused dropout path uses the TPU hardware PRNG (pltpu.prng_seed /
    # prng_random_bits), which only lowers on a real TPU backend — exercise it
    # only when one is present so the script also runs clean under CPU interpret.
    if jax.default_backend() == "tpu":
        out_train = positional_embedding_forward(x, pe_table, p=0.1, train=True, seed=1234)
        out_train = jax.block_until_ready(out_train)
        scaled = ref / (1.0 - 0.1)
        ok = jnp.logical_or(jnp.isclose(out_train, 0.0),
                            jnp.isclose(out_train, scaled, atol=1e-5, rtol=1e-5))
        assert bool(jnp.all(ok)), "train-mode dropout values are not {0, x/(1-p)}"

    print("KERNEL_OK")
</pallas_src>

<mosaic_0001>
module attributes {stable_mosaic.version = 11 : i64} {
  func.func @_pos_emb_eval_kernel(%arg0: i32, %arg1: i32, %arg2: memref<2x8x128xf32, #tpu.memory_space<vmem>>, %arg3: memref<1x8x128xf32, #tpu.memory_space<vmem>>, %arg4: memref<2x8x128xf32, #tpu.memory_space<vmem>>) attributes {dimension_semantics = [#tpu.dimension_semantics<parallel>, #tpu.dimension_semantics<parallel>], iteration_bounds = array<i64: 1, 1>, scalar_prefetch = 0 : i64, scratch_operands = 0 : i64, tpu.core_type = #tpu.core_type<tc>, window_params = [{transform_indices = @transform_0, window_bounds = array<i64: 2, 8, 128>}, {transform_indices = @transform_1, window_bounds = array<i64: 1, 8, 128>}, {transform_indices = @transform_2, window_bounds = array<i64: 2, 8, 128>}]} {
    %c0 = arith.constant 0 : index
    %c0_0 = arith.constant 0 : index
    %c0_1 = arith.constant 0 : index
    %0 = vector.load %arg2[%c0, %c0_0, %c0_1] : memref<2x8x128xf32, #tpu.memory_space<vmem>>, vector<2x8x128xf32>
    %c0_2 = arith.constant 0 : index
    %c0_3 = arith.constant 0 : index
    %c0_4 = arith.constant 0 : index
    %1 = vector.load %arg3[%c0_2, %c0_3, %c0_4] : memref<1x8x128xf32, #tpu.memory_space<vmem>>, vector<1x8x128xf32>
    %2 = vector.broadcast %1 : vector<1x8x128xf32> to vector<2x8x128xf32>
    %3 = arith.addf %0, %2 : vector<2x8x128xf32>
    %c0_5 = arith.constant 0 : index
    %c0_6 = arith.constant 0 : index
    %c0_7 = arith.constant 0 : index
    %4 = vector.load %arg4[%c0_5, %c0_6, %c0_7] : memref<2x8x128xf32, #tpu.memory_space<vmem>>, vector<2x8x128xf32>
    tpu.vector_store %arg4[%c0_5, %c0_6, %c0_7], %3 {strides = array<i32>} : memref<2x8x128xf32, #tpu.memory_space<vmem>>, vector<2x8x128xf32>,
    return
  }
  func.func @transform_0(%arg0: i32, %arg1: i32) -> (i32, i32, i32) {
    %c0_i32 = arith.constant 0 : i32
    %c0_i32_0 = arith.constant 0 : i32
    return %arg0, %arg1, %c0_i32 : i32, i32, i32
  }
  func.func @transform_1(%arg0: i32, %arg1: i32) -> (i32, i32, i32) {
    %c0_i32 = arith.constant 0 : i32
    %c0_i32_0 = arith.constant 0 : i32
    %c0_i32_1 = arith.constant 0 : i32
    return %c0_i32, %arg1, %c0_i32_0 : i32, i32, i32
  }
  func.func @transform_2(%arg0: i32, %arg1: i32) -> (i32, i32, i32) {
    %c0_i32 = arith.constant 0 : i32
    %c0_i32_0 = arith.constant 0 : i32
    return %arg0, %arg1, %c0_i32 : i32, i32, i32
  }
}

</mosaic_0001>

<llo_original>
// kernel: tpu_custom_call.1
$region0: #{tpu_custom_call.1}
  #allocation0 [shape = 'u32[]', space=smem, size = 0x4, offset = 0x4, fixed_abs, tag = 'smem constant byte address 0x4 - core index']
  #allocation1 [shape = 'u32[72,128]{1,0:T(1,128)}', space=vmem, size = 0x9000, scoped, tag = 'internal scratch']
  %s0 = inlined_call_operand.hbm [shape: f32[2,8,128], index: 0, kind: input, shape index: {}]
  %s1 = inlined_call_operand.hbm [shape: f32[1,8,128], index: 1, kind: input, shape index: {}]
  %s2 = inlined_call_operand.hbm [shape: f32[2,8,128], index: 2, kind: output, shape index: {}]
  %s3 = sld [smem:[#allocation0]]
  $region26: #{tpu_custom_call.1} parent=0
    _
  %s5 = ssub.s32 1, %s3
  %s6 = scalar_select 0, %s5, %s3
  $region1: #{tpu_custom_call.1} parent=0
    #allocation2 [shape = 'u8[8192]{0}', space=vmem, size = 0x2000, scoped, tag = 'input window, operand 0, single buffered']
    #allocation3 [shape = 's32[1]{0}', space=sflag, size = 0x4, scoped, tag = 'scoped memory for tpu_custom_call.1']
    #allocation4 [shape = 's32[1]{0}', space=sflag, size = 0x4, scoped, tag = 'scoped memory for tpu_custom_call.1']
    #allocation5 [shape = 'u8[4096]{0}', space=vmem, size = 0x1000, scoped, tag = 'input window, operand 1, single buffered']
    #allocation6 [shape = 's32[1]{0}', space=sflag, size = 0x4, scoped, tag = 'scoped memory for tpu_custom_call.1']
    #allocation7 [shape = 'u8[8192]{0}', space=vmem, size = 0x2000, scoped, tag = 'output window, operand 0, single buffered']
    %7 = vsyncpa [#allocation3], 0
    %8 = vsyncpa [#allocation6], 0
    %9 = vsyncpa [#allocation4], 0
    // Predicated region
    $region2: #{tpu_custom_call.1} parent=1 // pred_check
      _
    $region3: #{tpu_custom_call.1} parent=1 // pred_check_branch
      %11 = sbr.rel (0) target = $region5
    $region4: #{tpu_custom_call.1} parent=1 // pred_region
      %13 = vsyncadd [#allocation3], 0
      %s14 = sshll.u32 %s0, 4
      %s15 = int_to_ptr.hbm [resolvable:$true] %s14
      %s16 = sshll.u32 [#allocation2], 4
      %s17 = int_to_ptr.vmem [resolvable:$true] %s16
      %22 = dma.hbm_to_vmem [thread:$0]  %s15, 256, %s17, [#allocation3], 128, 128, 8
    $region5: #{tpu_custom_call.1} parent=1 // pred_fallthru
      _
    // Predicated region
    $region6: #{tpu_custom_call.1} parent=1 // pred_check
      _
    $region7: #{tpu_custom_call.1} parent=1 // pred_check_branch
      %24 = sbr.rel (0) target = $region9
    $region8: #{tpu_custom_call.1} parent=1 // pred_region
      %26 = vsyncadd [#allocation6], 0
      %s28 = sshll.u32 %s1, 4
      %s29 = int_to_ptr.hbm [resolvable:$true] %s28
      %s30 = sshll.u32 [#allocation5], 4
      %s31 = int_to_ptr.vmem [resolvable:$true] %s30
      %33 = dma.hbm_to_vmem [thread:$0]  %s29, 128, %s31, [#allocation6]
    $region9: #{tpu_custom_call.1} parent=1 // pred_fallthru
      _
    // Predicated region
    $region10: #{tpu_custom_call.1} parent=1 // pred_check
      _
    $region11: #{tpu_custom_call.1} parent=1 // pred_check_branch
      %35 = sbr.rel (0) target = $region13
    $region12: #{tpu_custom_call.1} parent=1 // pred_region
      %37 = dma.done [#allocation3], 256
    $region13: #{tpu_custom_call.1} parent=1 // pred_fallthru
      _
    // Predicated region
    $region14: #{tpu_custom_call.1} parent=1 // pred_check
      _
    $region15: #{tpu_custom_call.1} parent=1 // pred_check_branch
      %39 = sbr.rel (0) target = $region17
    $region16: #{tpu_custom_call.1} parent=1 // pred_region
      %41 = dma.done [#allocation6], 128
    $region17: #{tpu_custom_call.1} parent=1 // pred_fallthru
      _
    %v42 = vld [vmem:[#allocation2] sm:$0xff]
    %v43 = vld [vmem:[#allocation2 + $0x8] sm:$0xff]
    %v44 = vld [vmem:[#allocation5] sm:$0xff]
    %v45 = vadd.f32 %v42, %v44
    %v46 = vadd.f32 %v43, %v44
    %47 = vst [vmem:[#allocation7] sm:$0xff] %v45
    %48 = vst [vmem:[#allocation7 + $0x8] sm:$0xff] %v46
    // Predicated region
    $region18: #{tpu_custom_call.1} parent=1 // pred_check
      _
    $region19: #{tpu_custom_call.1} parent=1 // pred_check_branch
      %50 = sbr.rel (0) target = $region21
    $region20: #{tpu_custom_call.1} parent=1 // pred_region
      %52 = vsyncadd [#allocation4], 0
      %s53 = sshll.u32 [#allocation7], 4
      %s54 = int_to_ptr.vmem [resolvable:$true] %s53
      %s55 = sshll.u32 %s2, 4
      %s56 = int_to_ptr.hbm [resolvable:$true] %s55
      %61 = dma.vmem_to_hbm [thread:$0]  %s54, 256, %s56, [#allocation4], 128, 128, 8
    $region21: #{tpu_custom_call.1} parent=1 // pred_fallthru
      _
    // Predicated region
    $region22: #{tpu_custom_call.1} parent=1 // pred_check
      _
    $region23: #{tpu_custom_call.1} parent=1 // pred_check_branch
      %63 = sbr.rel (0) target = $region25
    $region24: #{tpu_custom_call.1} parent=1 // pred_region
      %65 = dma.done [#allocation4], 256
    $region25: #{tpu_custom_call.1} parent=1 // pred_fallthru
      _
    %66 = vsyncpa [#allocation3], 1
    %67 = vsyncpa [#allocation6], 1
    %68 = vsyncpa [#allocation4], 1

</llo_original>
